<compile_context>
chip_gen: v7x
topology: tpu7x:2x2x1
jax: 0.10.0
libtpu: 0.0.40
codegen_flags: <defaults>
</compile_context>

<pallas_src>
import functools

import numpy as np

import jax
import jax.numpy as jnp
from jax import lax
from jax.experimental import pallas as pl
from jax.experimental.pallas import tpu as pltpu


_VMEM_BUDGET = 24 * 1024 * 1024   # per-step footprint target
_VMEM_LIMIT = 32 * 1024 * 1024    # scoped VMEM request (<= all gens' limits)


def _round_up(x, m):
    return ((x + m - 1) // m) * m


def _dwconv_bn_kernel(x_ref, p_ref, m_ref, o_ref, xpad_ref, *, N, H, W, eps):
    """One channel-block of fused depthwise 3x3 conv (stride 1, pad 1) + BN.

    x_ref   : (N, ct, H*W)   input block (NCHW, spatial flattened on lanes)
    p_ref   : (ct, 11)       per-channel params: 9 conv taps | gamma | beta
    m_ref   : (2, 1, H*W)    f32 {0,1} lane masks: [0]: w>=1 valid, [1]: w<=W-2
    o_ref   : (N, ct, H*W)   output block
    xpad_ref: (N, ct, PAD)   f32 scratch; input lives at lane offset W+1,
                             the rest is a zero halo
    """
    HW = H * W
    OFF = W + 1
    ct = o_ref.shape[1]

    # Halo padding in VMEM (no HBM pad pass): zero the scratch once, then drop
    # the input block in with a single f32 cast.
    xpad_ref[...] = jnp.zeros_like(xpad_ref)
    xpad_ref[:, :, OFF:OFF + HW] = x_ref[...].astype(jnp.float32)

    params = p_ref[...].astype(jnp.float32)          # (ct, 11), read once
    masks = m_ref[...]                               # (2, 1, HW) f32 {0,1}

    # 9 shifted multiply-adds on the flattened spatial axis.  A flat shift of
    # dh*W + dw only misbehaves on the within-row wrap of dw=+/-1, which the
    # lane mask zeroes; everything else lands in the zero halo.
    acc = None
    for dh in (-1, 0, 1):
        for dw in (-1, 0, 1):
            k = (dh + 1) * 3 + (dw + 1)
            start = OFF + dh * W + dw
            win = xpad_ref[:, :, start:start + HW]   # (N, ct, HW) f32 window
            if dw == -1:
                win = win * masks[0:1]               # (1,1,HW) lane mask
            elif dw == 1:
                win = win * masks[1:2]
            tap = win * params[:, k:k + 1]           # (ct,1) per-channel tap
            acc = tap if acc is None else acc + tap

    # Training-mode BatchNorm2d: exact two-pass batch stats over (N, H, W)
    # (biased variance, like PyTorch), folded into scale/shift.
    cnt = jnp.float32(N * HW)
    mean = jnp.sum(acc, axis=(0, 2), keepdims=True) / cnt          # (1, ct, 1)
    centered = acc - mean
    var = jnp.sum(centered * centered, axis=(0, 2), keepdims=True) / cnt
    inv = lax.rsqrt(var + jnp.float32(eps))
    gamma = params[:, 9:10]                                         # (ct, 1)
    beta = params[:, 10:11]
    o_ref[...] = (centered * (gamma * inv) + beta).astype(o_ref.dtype)


def _pick_ct(N, C, HW, PAD, in_bytes, out_bytes, budget=_VMEM_BUDGET):
    """Largest channel tile (fewest grid steps) whose per-step VMEM footprint
    fits `budget`.  Counts double-buffered in/out/param blocks at their
    (8,128) tile-padded size, the halo scratch, and ~4 accumulator-sized f32
    temporaries (acc, centered, transient tap/sum temps)."""
    lanes = _round_up(HW, 128)

    def est(ct):
        blk_in = 2 * N * ct * lanes * in_bytes
        blk_out = 2 * N * ct * lanes * out_bytes
        blk_par = 2 * ct * 128 * 4
        scratch = N * ct * _round_up(PAD, 128) * 4
        temps = 4 * N * ct * lanes * 4
        mask = 2 * 2 * 8 * lanes * 4
        return blk_in + blk_out + blk_par + scratch + temps + mask

    cands = [d for d in range(1, C + 1)
             if C % d == 0 and (d == C or d % 8 == 0)]
    cands.sort(reverse=True)              # largest tile = fewest steps first
    for ct in cands:
        if est(ct) <= budget:
            return ct
    return cands[-1]                      # smallest valid tile as a fallback


def dwconv_bn(x_nchw, weight, gamma, beta, *, eps=1e-5, ct=None):
    """Fused Conv2d(C, C, 3, stride=1, pad=1, groups=C, bias=False) +
    training-mode BatchNorm2d, computed natively in NCHW.

    x_nchw: (N, C, H, W); weight: (C, 1, 3, 3) (PyTorch layout);
    gamma/beta: (C,)."""
    N, C, H, W = x_nchw.shape
    HW = H * W
    PAD = _round_up(HW + 2 * (W + 1), 128)
    itemsize = jnp.dtype(x_nchw.dtype).itemsize

    if ct is None:
        ct = _pick_ct(N, C, HW, PAD, itemsize, itemsize)
    assert C % ct == 0 and (ct == C or ct % 8 == 0), (C, ct)

    # Free reshape: NCHW stays NCHW, spatial just flattens onto the lane axis.
    x3 = x_nchw.reshape(N, C, HW)
    # All per-channel parameters packed into one small array (one tiled input).
    params = jnp.concatenate(
        [weight.reshape(C, 9).astype(jnp.float32),
         gamma.reshape(C, 1).astype(jnp.float32),
         beta.reshape(C, 1).astype(jnp.float32)], axis=1)           # (C, 11)
    # Precomputed {0,1} lane masks for the dw=-1 / dw=+1 taps.
    w_of_p = np.arange(HW) % W
    masks = jnp.asarray(
        np.stack([w_of_p >= 1, w_of_p <= W - 2])[:, None, :]
        .astype(np.float32))                                        # (2, 1, HW)

    kernel = functools.partial(_dwconv_bn_kernel, N=N, H=H, W=W, eps=eps)
    out = pl.pallas_call(
        kernel,
        out_shape=jax.ShapeDtypeStruct((N, C, HW), x_nchw.dtype),
        grid_spec=pltpu.PrefetchScalarGridSpec(
            num_scalar_prefetch=0,
            grid=(C // ct,),
            in_specs=[
                pl.BlockSpec((N, ct, HW), lambda c: (0, c, 0)),
                pl.BlockSpec((ct, 11), lambda c: (c, 0)),
                pl.BlockSpec((2, 1, HW), lambda c: (0, 0, 0)),
            ],
            out_specs=pl.BlockSpec((N, ct, HW), lambda c: (0, c, 0)),
            scratch_shapes=[pltpu.VMEM((N, ct, PAD), jnp.float32)],
        ),
        compiler_params=pltpu.CompilerParams(
            dimension_semantics=("parallel",),
            vmem_limit_bytes=_VMEM_LIMIT,
        ),
    )(x3, params, masks)
    return out.reshape(N, C, H, W)


def reference(x_nchw, weight, gamma, beta, eps=1e-5):
    N, C, H, W = x_nchw.shape
    y = lax.conv_general_dilated(
        x_nchw.astype(jnp.float32), weight.astype(jnp.float32),
        window_strides=(1, 1), padding=((1, 1), (1, 1)),
        dimension_numbers=("NCHW", "OIHW", "NCHW"),
        feature_group_count=C)
    mean = jnp.mean(y, axis=(0, 2, 3), keepdims=True)
    var = jnp.mean((y - mean) ** 2, axis=(0, 2, 3), keepdims=True)
    y = (y - mean) * lax.rsqrt(var + eps)
    return y * gamma[None, :, None, None] + beta[None, :, None, None]


if __name__ == "__main__":
    key = jax.random.PRNGKey(0)

    def run_case(N, C, H, W, ct=None):
        ks = jax.random.split(jax.random.fold_in(key, C * 1000 + H * 10 + W), 4)
        x = jax.random.normal(ks[0], (N, C, H, W), dtype=jnp.float32)
        w = 0.1 * jax.random.normal(ks[1], (C, 1, 3, 3), dtype=jnp.float32)
        gamma = 1.0 + 0.1 * jax.random.normal(ks[2], (C,), dtype=jnp.float32)
        beta = 0.1 * jax.random.normal(ks[3], (C,), dtype=jnp.float32)
        out = jax.block_until_ready(dwconv_bn(x, w, gamma, beta, ct=ct))
        ref = reference(x, w, gamma, beta)
        assert out.shape == (N, C, H, W)
        err = float(jnp.max(jnp.abs(out - ref)))
        assert jnp.allclose(out, ref, rtol=2e-4, atol=2e-4), err

    # Small smoke tests (single step, forced multi-step grid, H != W).
    run_case(2, 32, 7, 7)
    run_case(2, 32, 7, 7, ct=8)
    run_case(1, 64, 5, 9, ct=16)
    # The actual module shape (1, 3456, 7, 7): single grid step, ct = 3456.
    run_case(1, 3456, 7, 7)
    print("KERNEL_OK")
</pallas_src>

<mosaic_0001>
module attributes {stable_mosaic.version = 11 : i64} {
  func.func @_dwconv_bn_kernel(%arg0: i32, %arg1: memref<2x32x49xf32, #tpu.memory_space<vmem>>, %arg2: memref<32x11xf32, #tpu.memory_space<vmem>>, %arg3: memref<2x1x49xf32, #tpu.memory_space<vmem>>, %arg4: memref<2x32x49xf32, #tpu.memory_space<vmem>>, %arg5: memref<2x32x128xf32, #tpu.memory_space<vmem>>) attributes {dimension_semantics = [#tpu.dimension_semantics<parallel>], iteration_bounds = array<i64: 1>, scalar_prefetch = 0 : i64, scratch_operands = 1 : i64, tpu.core_type = #tpu.core_type<tc>, window_params = [{transform_indices = @transform_0, window_bounds = array<i64: 2, 32, 49>}, {transform_indices = @transform_1, window_bounds = array<i64: 32, 11>}, {pipeline_mode = #tpu.pipeline_mode<synchronous>, transform_indices = @transform_2, window_bounds = array<i64: 2, 1, 49>}, {transform_indices = @transform_3, window_bounds = array<i64: 2, 32, 49>}]} {
    %cst = arith.constant 0.000000e+00 : f32
    %0 = vector.broadcast %cst : f32 to vector<2x32x128xf32>
    %c0 = arith.constant 0 : index
    %c0_0 = arith.constant 0 : index
    %c0_1 = arith.constant 0 : index
    %1 = vector.load %arg5[%c0, %c0_0, %c0_1] : memref<2x32x128xf32, #tpu.memory_space<vmem>>, vector<2x32x128xf32>
    tpu.vector_store %arg5[%c0, %c0_0, %c0_1], %0 {strides = array<i32>} : memref<2x32x128xf32, #tpu.memory_space<vmem>>, vector<2x32x128xf32>,
    %c0_2 = arith.constant 0 : index
    %c0_3 = arith.constant 0 : index
    %c0_4 = arith.constant 0 : index
    %2 = vector.load %arg1[%c0_2, %c0_3, %c0_4] : memref<2x32x49xf32, #tpu.memory_space<vmem>>, vector<2x32x49xf32>
    %c0_5 = arith.constant 0 : index
    %c0_6 = arith.constant 0 : index
    %c8 = arith.constant 8 : index
    %3 = vector.load %arg5[%c0_5, %c0_6, %c8] : memref<2x32x128xf32, #tpu.memory_space<vmem>>, vector<2x32x49xf32>
    tpu.vector_store %arg5[%c0_5, %c0_6, %c8], %2 {strides = array<i32>} : memref<2x32x128xf32, #tpu.memory_space<vmem>>, vector<2x32x49xf32>,
    %c0_7 = arith.constant 0 : index
    %c0_8 = arith.constant 0 : index
    %4 = vector.load %arg2[%c0_7, %c0_8] : memref<32x11xf32, #tpu.memory_space<vmem>>, vector<32x11xf32>
    %c0_9 = arith.constant 0 : index
    %c0_10 = arith.constant 0 : index
    %c0_11 = arith.constant 0 : index
    %5 = vector.load %arg3[%c0_9, %c0_10, %c0_11] : memref<2x1x49xf32, #tpu.memory_space<vmem>>, vector<2x1x49xf32>
    %c0_12 = arith.constant 0 : index
    %c0_13 = arith.constant 0 : index
    %c0_14 = arith.constant 0 : index
    %6 = vector.load %arg5[%c0_12, %c0_13, %c0_14] : memref<2x32x128xf32, #tpu.memory_space<vmem>>, vector<2x32x49xf32>
    %7 = vector.extract_strided_slice %5 {offsets = [0, 0, 0], sizes = [1, 1, 49], strides = [1, 1, 1]} : vector<2x1x49xf32> to vector<1x1x49xf32>
    %8 = vector.broadcast %7 : vector<1x1x49xf32> to vector<2x32x49xf32>
    %9 = arith.mulf %6, %8 : vector<2x32x49xf32>
    %10 = vector.extract_strided_slice %4 {offsets = [0, 0], sizes = [32, 1], strides = [1, 1]} : vector<32x11xf32> to vector<32x1xf32>
    %11 = vector.shape_cast %10 : vector<32x1xf32> to vector<1x32x1xf32>
    %12 = vector.broadcast %11 : vector<1x32x1xf32> to vector<2x32x49xf32>
    %13 = arith.mulf %9, %12 : vector<2x32x49xf32>
    %c0_15 = arith.constant 0 : index
    %c0_16 = arith.constant 0 : index
    %c1 = arith.constant 1 : index
    %14 = vector.load %arg5[%c0_15, %c0_16, %c1] : memref<2x32x128xf32, #tpu.memory_space<vmem>>, vector<2x32x49xf32>
    %15 = vector.extract_strided_slice %4 {offsets = [0, 1], sizes = [32, 1], strides = [1, 1]} : vector<32x11xf32> to vector<32x1xf32>
    %16 = vector.shape_cast %15 : vector<32x1xf32> to vector<1x32x1xf32>
    %17 = vector.broadcast %16 : vector<1x32x1xf32> to vector<2x32x49xf32>
    %18 = arith.mulf %14, %17 : vector<2x32x49xf32>
    %19 = arith.addf %13, %18 : vector<2x32x49xf32>
    %c0_17 = arith.constant 0 : index
    %c0_18 = arith.constant 0 : index
    %c2 = arith.constant 2 : index
    %20 = vector.load %arg5[%c0_17, %c0_18, %c2] : memref<2x32x128xf32, #tpu.memory_space<vmem>>, vector<2x32x49xf32>
    %21 = vector.extract_strided_slice %5 {offsets = [1, 0, 0], sizes = [1, 1, 49], strides = [1, 1, 1]} : vector<2x1x49xf32> to vector<1x1x49xf32>
    %22 = vector.broadcast %21 : vector<1x1x49xf32> to vector<2x32x49xf32>
    %23 = arith.mulf %20, %22 : vector<2x32x49xf32>
    %24 = vector.extract_strided_slice %4 {offsets = [0, 2], sizes = [32, 1], strides = [1, 1]} : vector<32x11xf32> to vector<32x1xf32>
    %25 = vector.shape_cast %24 : vector<32x1xf32> to vector<1x32x1xf32>
    %26 = vector.broadcast %25 : vector<1x32x1xf32> to vector<2x32x49xf32>
    %27 = arith.mulf %23, %26 : vector<2x32x49xf32>
    %28 = arith.addf %19, %27 : vector<2x32x49xf32>
    %c0_19 = arith.constant 0 : index
    %c0_20 = arith.constant 0 : index
    %c7 = arith.constant 7 : index
    %29 = vector.load %arg5[%c0_19, %c0_20, %c7] : memref<2x32x128xf32, #tpu.memory_space<vmem>>, vector<2x32x49xf32>
    %30 = vector.extract_strided_slice %5 {offsets = [0, 0, 0], sizes = [1, 1, 49], strides = [1, 1, 1]} : vector<2x1x49xf32> to vector<1x1x49xf32>
    %31 = vector.broadcast %30 : vector<1x1x49xf32> to vector<2x32x49xf32>
    %32 = arith.mulf %29, %31 : vector<2x32x49xf32>
    %33 = vector.extract_strided_slice %4 {offsets = [0, 3], sizes = [32, 1], strides = [1, 1]} : vector<32x11xf32> to vector<32x1xf32>
    %34 = vector.shape_cast %33 : vector<32x1xf32> to vector<1x32x1xf32>
    %35 = vector.broadcast %34 : vector<1x32x1xf32> to vector<2x32x49xf32>
    %36 = arith.mulf %32, %35 : vector<2x32x49xf32>
    %37 = arith.addf %28, %36 : vector<2x32x49xf32>
    %c0_21 = arith.constant 0 : index
    %c0_22 = arith.constant 0 : index
    %c8_23 = arith.constant 8 : index
    %38 = vector.load %arg5[%c0_21, %c0_22, %c8_23] : memref<2x32x128xf32, #tpu.memory_space<vmem>>, vector<2x32x49xf32>
    %39 = vector.extract_strided_slice %4 {offsets = [0, 4], sizes = [32, 1], strides = [1, 1]} : vector<32x11xf32> to vector<32x1xf32>
    %40 = vector.shape_cast %39 : vector<32x1xf32> to vector<1x32x1xf32>
    %41 = vector.broadcast %40 : vector<1x32x1xf32> to vector<2x32x49xf32>
    %42 = arith.mulf %38, %41 : vector<2x32x49xf32>
    %43 = arith.addf %37, %42 : vector<2x32x49xf32>
    %c0_24 = arith.constant 0 : index
    %c0_25 = arith.constant 0 : index
    %c9 = arith.constant 9 : index
    %44 = vector.load %arg5[%c0_24, %c0_25, %c9] : memref<2x32x128xf32, #tpu.memory_space<vmem>>, vector<2x32x49xf32>
    %45 = vector.extract_strided_slice %5 {offsets = [1, 0, 0], sizes = [1, 1, 49], strides = [1, 1, 1]} : vector<2x1x49xf32> to vector<1x1x49xf32>
    %46 = vector.broadcast %45 : vector<1x1x49xf32> to vector<2x32x49xf32>
    %47 = arith.mulf %44, %46 : vector<2x32x49xf32>
    %48 = vector.extract_strided_slice %4 {offsets = [0, 5], sizes = [32, 1], strides = [1, 1]} : vector<32x11xf32> to vector<32x1xf32>
    %49 = vector.shape_cast %48 : vector<32x1xf32> to vector<1x32x1xf32>
    %50 = vector.broadcast %49 : vector<1x32x1xf32> to vector<2x32x49xf32>
    %51 = arith.mulf %47, %50 : vector<2x32x49xf32>
    %52 = arith.addf %43, %51 : vector<2x32x49xf32>
    %c0_26 = arith.constant 0 : index
    %c0_27 = arith.constant 0 : index
    %c14 = arith.constant 14 : index
    %53 = vector.load %arg5[%c0_26, %c0_27, %c14] : memref<2x32x128xf32, #tpu.memory_space<vmem>>, vector<2x32x49xf32>
    %54 = vector.extract_strided_slice %5 {offsets = [0, 0, 0], sizes = [1, 1, 49], strides = [1, 1, 1]} : vector<2x1x49xf32> to vector<1x1x49xf32>
    %55 = vector.broadcast %54 : vector<1x1x49xf32> to vector<2x32x49xf32>
    %56 = arith.mulf %53, %55 : vector<2x32x49xf32>
    %57 = vector.extract_strided_slice %4 {offsets = [0, 6], sizes = [32, 1], strides = [1, 1]} : vector<32x11xf32> to vector<32x1xf32>
    %58 = vector.shape_cast %57 : vector<32x1xf32> to vector<1x32x1xf32>
    %59 = vector.broadcast %58 : vector<1x32x1xf32> to vector<2x32x49xf32>
    %60 = arith.mulf %56, %59 : vector<2x32x49xf32>
    %61 = arith.addf %52, %60 : vector<2x32x49xf32>
    %c0_28 = arith.constant 0 : index
    %c0_29 = arith.constant 0 : index
    %c15 = arith.constant 15 : index
    %62 = vector.load %arg5[%c0_28, %c0_29, %c15] : memref<2x32x128xf32, #tpu.memory_space<vmem>>, vector<2x32x49xf32>
    %63 = vector.extract_strided_slice %4 {offsets = [0, 7], sizes = [32, 1], strides = [1, 1]} : vector<32x11xf32> to vector<32x1xf32>
    %64 = vector.shape_cast %63 : vector<32x1xf32> to vector<1x32x1xf32>
    %65 = vector.broadcast %64 : vector<1x32x1xf32> to vector<2x32x49xf32>
    %66 = arith.mulf %62, %65 : vector<2x32x49xf32>
    %67 = arith.addf %61, %66 : vector<2x32x49xf32>
    %c0_30 = arith.constant 0 : index
    %c0_31 = arith.constant 0 : index
    %c16 = arith.constant 16 : index
    %68 = vector.load %arg5[%c0_30, %c0_31, %c16] : memref<2x32x128xf32, #tpu.memory_space<vmem>>, vector<2x32x49xf32>
    %69 = vector.extract_strided_slice %5 {offsets = [1, 0, 0], sizes = [1, 1, 49], strides = [1, 1, 1]} : vector<2x1x49xf32> to vector<1x1x49xf32>
    %70 = vector.broadcast %69 : vector<1x1x49xf32> to vector<2x32x49xf32>
    %71 = arith.mulf %68, %70 : vector<2x32x49xf32>
    %72 = vector.extract_strided_slice %4 {offsets = [0, 8], sizes = [32, 1], strides = [1, 1]} : vector<32x11xf32> to vector<32x1xf32>
    %73 = vector.shape_cast %72 : vector<32x1xf32> to vector<1x32x1xf32>
    %74 = vector.broadcast %73 : vector<1x32x1xf32> to vector<2x32x49xf32>
    %75 = arith.mulf %71, %74 : vector<2x32x49xf32>
    %76 = arith.addf %67, %75 : vector<2x32x49xf32>
    %cst_32 = arith.constant dense<0.000000e+00> : vector<32xf32>
    %77 = vector.multi_reduction <add>, %76, %cst_32 [0, 2] : vector<2x32x49xf32> to vector<32xf32>
    %78 = vector.shape_cast %77 : vector<32xf32> to vector<1x32x1xf32>
    %cst_33 = arith.constant 9.800000e+01 : f32
    %79 = vector.broadcast %cst_33 : f32 to vector<1x32x1xf32>
    %80 = arith.divf %78, %79 : vector<1x32x1xf32>
    %81 = vector.broadcast %80 : vector<1x32x1xf32> to vector<2x32x49xf32>
    %82 = arith.subf %76, %81 : vector<2x32x49xf32>
    %83 = arith.mulf %82, %82 : vector<2x32x49xf32>
    %cst_34 = arith.constant dense<0.000000e+00> : vector<32xf32>
    %84 = vector.multi_reduction <add>, %83, %cst_34 [0, 2] : vector<2x32x49xf32> to vector<32xf32>
    %85 = vector.shape_cast %84 : vector<32xf32> to vector<1x32x1xf32>
    %cst_35 = arith.constant 9.800000e+01 : f32
    %86 = vector.broadcast %cst_35 : f32 to vector<1x32x1xf32>
    %87 = arith.divf %85, %86 : vector<1x32x1xf32>
    %cst_36 = arith.constant 9.99999974E-6 : f32
    %88 = vector.broadcast %cst_36 : f32 to vector<1x32x1xf32>
    %89 = arith.addf %87, %88 : vector<1x32x1xf32>
    %90 = math.rsqrt %89 : vector<1x32x1xf32>
    %91 = vector.extract_strided_slice %4 {offsets = [0, 9], sizes = [32, 1], strides = [1, 1]} : vector<32x11xf32> to vector<32x1xf32>
    %92 = vector.extract_strided_slice %4 {offsets = [0, 10], sizes = [32, 1], strides = [1, 1]} : vector<32x11xf32> to vector<32x1xf32>
    %93 = vector.shape_cast %91 : vector<32x1xf32> to vector<1x32x1xf32>
    %94 = arith.mulf %93, %90 : vector<1x32x1xf32>
    %95 = vector.broadcast %94 : vector<1x32x1xf32> to vector<2x32x49xf32>
    %96 = arith.mulf %82, %95 : vector<2x32x49xf32>
    %97 = vector.shape_cast %92 : vector<32x1xf32> to vector<1x32x1xf32>
    %98 = vector.broadcast %97 : vector<1x32x1xf32> to vector<2x32x49xf32>
    %99 = arith.addf %96, %98 : vector<2x32x49xf32>
    %c0_37 = arith.constant 0 : index
    %c0_38 = arith.constant 0 : index
    %c0_39 = arith.constant 0 : index
    %100 = vector.load %arg4[%c0_37, %c0_38, %c0_39] : memref<2x32x49xf32, #tpu.memory_space<vmem>>, vector<2x32x49xf32>
    tpu.vector_store %arg4[%c0_37, %c0_38, %c0_39], %99 {strides = array<i32>} : memref<2x32x49xf32, #tpu.memory_space<vmem>>, vector<2x32x49xf32>,
    return
  }
  func.func @transform_0(%arg0: i32) -> (i32, i32, i32) {
    %c0_i32 = arith.constant 0 : i32
    %c0_i32_0 = arith.constant 0 : i32
    %c0_i32_1 = arith.constant 0 : i32
    return %c0_i32, %arg0, %c0_i32_0 : i32, i32, i32
  }
  func.func @transform_1(%arg0: i32) -> (i32, i32) {
    %c0_i32 = arith.constant 0 : i32
    %c0_i32_0 = arith.constant 0 : i32
    return %arg0, %c0_i32 : i32, i32
  }
  func.func @transform_2(%arg0: i32) -> (i32, i32, i32) {
    %c0_i32 = arith.constant 0 : i32
    %c0_i32_0 = arith.constant 0 : i32
    %c0_i32_1 = arith.constant 0 : i32
    %c0_i32_2 = arith.constant 0 : i32
    return %c0_i32, %c0_i32_0, %c0_i32_1 : i32, i32, i32
  }
  func.func @transform_3(%arg0: i32) -> (i32, i32, i32) {
    %c0_i32 = arith.constant 0 : i32
    %c0_i32_0 = arith.constant 0 : i32
    %c0_i32_1 = arith.constant 0 : i32
    return %c0_i32, %arg0, %c0_i32_0 : i32, i32, i32
  }
}

</mosaic_0001>

<llo_original>
// kernel: tpu_custom_call.1
$region0: #{tpu_custom_call.1}
  #allocation0 [shape = 'u32[]', space=smem, size = 0x4, offset = 0x4, fixed_abs, tag = 'smem constant byte address 0x4 - core index']
  #allocation1 [shape = 'u32[144,128]{1,0:T(1,128)}', space=vmem, size = 0x12000, scoped, tag = 'internal scratch']
  #allocation2 [shape = 'f32[2,32,128]{2,1,0:T(8,128)}', space=vmem, size = 0x8000, scoped, tag = 'scratch operand']
  %s0 = inlined_call_operand.hbm [shape: f32[2,32,49], index: 0, kind: input, shape index: {}]
  %s1 = inlined_call_operand.vmem [shape: f32[32,11], index: 1, kind: input, shape index: {}]
  %s2 = inlined_call_operand.vmem [shape: f32[2,1,49], index: 2, kind: input, shape index: {}]
  %s3 = inlined_call_operand.hbm [shape: f32[2,32,49], index: 3, kind: output, shape index: {}]
  %s4 = sld [smem:[#allocation0]]
  $region26: #{tpu_custom_call.1} parent=0
    _
  %s6 = ssub.s32 1, %s4
  %s7 = scalar_select 0, %s6, %s4
  $region1: #{tpu_custom_call.1} parent=0
    #allocation3 [shape = 'u8[32768]{0}', space=vmem, size = 0x8000, scoped, tag = 'input window, operand 0, single buffered']
    #allocation4 [shape = 's32[1]{0}', space=sflag, size = 0x4, scoped, tag = 'scoped memory for tpu_custom_call.1']
    #allocation5 [shape = 's32[1]{0}', space=sflag, size = 0x4, scoped, tag = 'scoped memory for tpu_custom_call.1']
    #allocation6 [shape = 'u8[32768]{0}', space=vmem, size = 0x8000, scoped, tag = 'output window, operand 0, single buffered']
    %8 = vsyncpa [#allocation4], 0
    %9 = vsyncpa [#allocation5], 0
    // Predicated region
    $region2: #{tpu_custom_call.1} parent=1 // pred_check
      _
    $region3: #{tpu_custom_call.1} parent=1 // pred_check_branch
      %11 = sbr.rel (0) target = $region5
    $region4: #{tpu_custom_call.1} parent=1 // pred_region
      %s13 = ssub.s32 1024, 1024
      %14 = vsyncadd [#allocation4], %s13
      %s15 = sshll.u32 [#allocation3], 4
      %s16 = int_to_ptr.vmem [resolvable:$true] %s15
      %21 = dma.hbm_to_vmem [thread:$0]  %s0, 1024, %s16, [#allocation4], 128, 128, 8
    $region5: #{tpu_custom_call.1} parent=1 // pred_fallthru
      _
    // Predicated region
    $region6: #{tpu_custom_call.1} parent=1 // pred_check
      _
    $region7: #{tpu_custom_call.1} parent=1 // pred_check_branch
      %23 = sbr.rel (0) target = $region9
    $region8: #{tpu_custom_call.1} parent=1 // pred_region
      _
    $region9: #{tpu_custom_call.1} parent=1 // pred_fallthru
      _
    // Predicated region
    $region10: #{tpu_custom_call.1} parent=1 // pred_check
      _
    $region11: #{tpu_custom_call.1} parent=1 // pred_check_branch
      %25 = sbr.rel (0) target = $region13
    $region12: #{tpu_custom_call.1} parent=1 // pred_region
      _
    $region13: #{tpu_custom_call.1} parent=1 // pred_fallthru
      _
    // Predicated region
    $region14: #{tpu_custom_call.1} parent=1 // pred_check
      _
    $region15: #{tpu_custom_call.1} parent=1 // pred_check_branch
      %27 = sbr.rel (0) target = $region17
    $region16: #{tpu_custom_call.1} parent=1 // pred_region
      %28 = dma.done [#allocation4], 1024
    $region17: #{tpu_custom_call.1} parent=1 // pred_fallthru
      _
    %29 = vst [vmem:[#allocation2] sm:$0xff] 0.0
    %30 = vst [vmem:[#allocation2 + $0x8] sm:$0xff] 0.0
    %31 = vst [vmem:[#allocation2 + $0x10] sm:$0xff] 0.0
    %32 = vst [vmem:[#allocation2 + $0x18] sm:$0xff] 0.0
    %33 = vst [vmem:[#allocation2 + $0x20] sm:$0xff] 0.0
    %34 = vst [vmem:[#allocation2 + $0x28] sm:$0xff] 0.0
    %35 = vst [vmem:[#allocation2 + $0x30] sm:$0xff] 0.0
    %36 = vst [vmem:[#allocation2 + $0x38] sm:$0xff] 0.0
    %v37 = vld [vmem:[#allocation3] sm:$0xff]
    %v38 = vld [vmem:[#allocation3 + $0x8] sm:$0xff]
    %v39 = vld [vmem:[#allocation3 + $0x10] sm:$0xff]
    %v40 = vld [vmem:[#allocation3 + $0x18] sm:$0xff]
    %v41 = vld [vmem:[#allocation3 + $0x20] sm:$0xff]
    %v42 = vld [vmem:[#allocation3 + $0x28] sm:$0xff]
    %v43 = vld [vmem:[#allocation3 + $0x30] sm:$0xff]
    %v44 = vld [vmem:[#allocation3 + $0x38] sm:$0xff]
    %53 = vrot.lane.b32.xlu0 %v37, 8
    %v54 = vpop.permute.xlu0 %53
    %55 = vrot.lane.b32.xlu0 %v38, 8
    %v56 = vpop.permute.xlu0 %55
    %57 = vrot.lane.b32.xlu0 %v39, 8
    %v58 = vpop.permute.xlu0 %57
    %59 = vrot.lane.b32.xlu0 %v40, 8
    %v60 = vpop.permute.xlu0 %59
    %61 = vrot.lane.b32.xlu0 %v41, 8
    %v62 = vpop.permute.xlu0 %61
    %63 = vrot.lane.b32.xlu0 %v42, 8
    %v64 = vpop.permute.xlu0 %63
    %65 = vrot.lane.b32.xlu0 %v43, 8
    %v66 = vpop.permute.xlu0 %65
    %67 = vrot.lane.b32.xlu0 %v44, 8
    %v68 = vpop.permute.xlu0 %67
    %vm77 = vcmask 465984
    %78 = vst.msk [vmem:[#allocation2] sm:$0xff] %vm77, %v54
    %79 = vst.msk [vmem:[#allocation2 + $0x8] sm:$0xff] %vm77, %v56
    %80 = vst.msk [vmem:[#allocation2 + $0x10] sm:$0xff] %vm77, %v58
    %81 = vst.msk [vmem:[#allocation2 + $0x18] sm:$0xff] %vm77, %v60
    %82 = vst.msk [vmem:[#allocation2 + $0x20] sm:$0xff] %vm77, %v62
    %83 = vst.msk [vmem:[#allocation2 + $0x28] sm:$0xff] %vm77, %v64
    %84 = vst.msk [vmem:[#allocation2 + $0x30] sm:$0xff] %vm77, %v66
    %85 = vst.msk [vmem:[#allocation2 + $0x38] sm:$0xff] %vm77, %v68
    %v86 = vld [vmem:[%s1] sm:$0xff]
    %v87 = vld [vmem:[%s1 + $0x8] sm:$0xff]
    %v88 = vld [vmem:[%s1 + $0x10] sm:$0xff]
    %v89 = vld [vmem:[%s1 + $0x18] sm:$0xff]
    %v90 = vld [vmem:[%s2] sm:$0x1]
    %v91 = vld [vmem:[%s2 + $0x1] sm:$0x1]
    %v92 = vld [vmem:[#allocation2] sm:$0xff]
    %v93 = vld [vmem:[#allocation2 + $0x8] sm:$0xff]
    %v94 = vld [vmem:[#allocation2 + $0x10] sm:$0xff]
    %v95 = vld [vmem:[#allocation2 + $0x18] sm:$0xff]
    %v96 = vld [vmem:[#allocation2 + $0x20] sm:$0xff]
    %v97 = vld [vmem:[#allocation2 + $0x28] sm:$0xff]
    %v98 = vld [vmem:[#allocation2 + $0x30] sm:$0xff]
    %v99 = vld [vmem:[#allocation2 + $0x38] sm:$0xff]
    %v101 = vlaneseq
    %v102 = vshrl.u32 %v101, 7
    %v103 = vsub.s32 0, %v102
    %v104 = vrot.slane %v90, %v103
    %v106 = vmul.f32 %v92, %v104
    %v107 = vmul.f32 %v93, %v104
    %v108 = vmul.f32 %v94, %v104
    %v109 = vmul.f32 %v95, %v104
    %v110 = vmul.f32 %v96, %v104
    %v111 = vmul.f32 %v97, %v104
    %v112 = vmul.f32 %v98, %v104
    %v113 = vmul.f32 %v99, %v104
    %115 = vset.pattern.permute.xlu0 0
    %116 = vperm.xlu0 %115, %v86
    %v117 = vpop.permute.xlu0 %116
    %120 = vset.pattern.permute.xlu0 0
    %121 = vperm.xlu0 %120, %v87
    %v122 = vpop.permute.xlu0 %121
    %125 = vset.pattern.permute.xlu0 0
    %126 = vperm.xlu0 %125, %v88
    %v127 = vpop.permute.xlu0 %126
    %130 = vset.pattern.permute.xlu0 0
    %131 = vperm.xlu0 %130, %v89
    %v132 = vpop.permute.xlu0 %131
    %v134 = vmul.f32 %v106, %v117
    %v135 = vmul.f32 %v107, %v122
    %v136 = vmul.f32 %v108, %v127
    %v137 = vmul.f32 %v109, %v132
    %v138 = vmul.f32 %v110, %v117
    %v139 = vmul.f32 %v111, %v122
    %v140 = vmul.f32 %v112, %v127
    %v141 = vmul.f32 %v113, %v132
    %142 = vset.pattern.permute.xlu0 1
    %143 = vperm.xlu0 %142, %v86
    %v144 = vpop.permute.xlu0 %143
    %146 = vset.pattern.permute.xlu0 1
    %147 = vperm.xlu0 %146, %v87
    %v148 = vpop.permute.xlu0 %147
    %150 = vset.pattern.permute.xlu0 1
    %151 = vperm.xlu0 %150, %v88
    %v152 = vpop.permute.xlu0 %151
    %154 = vset.pattern.permute.xlu0 1
    %155 = vperm.xlu0 %154, %v89
    %v156 = vpop.permute.xlu0 %155
    %v158 = vmul.f32 %v92, %v144
    %v159 = vmul.f32 %v93, %v148
    %v160 = vmul.f32 %v94, %v152
    %v161 = vmul.f32 %v95, %v156
    %v162 = vmul.f32 %v96, %v144
    %v163 = vmul.f32 %v97, %v148
    %v164 = vmul.f32 %v98, %v152
    %v165 = vmul.f32 %v99, %v156
    %174 = vrot.lane.b32.xlu0 %v158, 127
    %v175 = vpop.permute.xlu0 %174
    %176 = vrot.lane.b32.xlu0 %v159, 127
    %v177 = vpop.permute.xlu0 %176
    %178 = vrot.lane.b32.xlu0 %v160, 127
    %v179 = vpop.permute.xlu0 %178
    %180 = vrot.lane.b32.xlu0 %v161, 127
    %v181 = vpop.permute.xlu0 %180
    %182 = vrot.lane.b32.xlu0 %v162, 127
    %v183 = vpop.permute.xlu0 %182
    %184 = vrot.lane.b32.xlu0 %v163, 127
    %v185 = vpop.permute.xlu0 %184
    %186 = vrot.lane.b32.xlu0 %v164, 127
    %v187 = vpop.permute.xlu0 %186
    %188 = vrot.lane.b32.xlu0 %v165, 127
    %v189 = vpop.permute.xlu0 %188
    %v198 = vadd.f32 %v134, %v175
    %v199 = vadd.f32 %v135, %v177
    %v200 = vadd.f32 %v136, %v179
    %v201 = vadd.f32 %v137, %v181
    %v202 = vadd.f32 %v138, %v183
    %v203 = vadd.f32 %v139, %v185
    %v204 = vadd.f32 %v140, %v187
    %v205 = vadd.f32 %v141, %v189
    %v207 = vlaneseq
    %v208 = vshrl.u32 %v207, 7
    %v209 = vsub.s32 0, %v208
    %v210 = vrot.slane %v91, %v209
    %211 = vrot.lane.b32.xlu0 %v210, 2
    %v212 = vpop.permute.xlu0 %211
    %v214 = vmul.f32 %v92, %v212
    %v215 = vmul.f32 %v93, %v212
    %v216 = vmul.f32 %v94, %v212
    %v217 = vmul.f32 %v95, %v212
    %v218 = vmul.f32 %v96, %v212
    %v219 = vmul.f32 %v97, %v212
    %v220 = vmul.f32 %v98, %v212
    %v221 = vmul.f32 %v99, %v212
    %222 = vset.pattern.permute.xlu0 2
    %223 = vperm.xlu0 %222, %v86
    %v224 = vpop.permute.xlu0 %223
    %226 = vset.pattern.permute.xlu0 2
    %227 = vperm.xlu0 %226, %v87
    %v228 = vpop.permute.xlu0 %227
    %230 = vset.pattern.permute.xlu0 2
    %231 = vperm.xlu0 %230, %v88
    %v232 = vpop.permute.xlu0 %231
    %234 = vset.pattern.permute.xlu0 2
    %235 = vperm.xlu0 %234, %v89
    %v236 = vpop.permute.xlu0 %235
    %v238 = vmul.f32 %v214, %v224
    %v239 = vmul.f32 %v215, %v228
    %v240 = vmul.f32 %v216, %v232
    %v241 = vmul.f32 %v217, %v236
    %v242 = vmul.f32 %v218, %v224
    %v243 = vmul.f32 %v219, %v228
    %v244 = vmul.f32 %v220, %v232
    %v245 = vmul.f32 %v221, %v236
    %254 = vrot.lane.b32.xlu0 %v238, 126
    %v255 = vpop.permute.xlu0 %254
    %256 = vrot.lane.b32.xlu0 %v239, 126
    %v257 = vpop.permute.xlu0 %256
    %258 = vrot.lane.b32.xlu0 %v240, 126
    %v259 = vpop.permute.xlu0 %258
    %260 = vrot.lane.b32.xlu0 %v241, 126
    %v261 = vpop.permute.xlu0 %260
    %262 = vrot.lane.b32.xlu0 %v242, 126
    %v263 = vpop.permute.xlu0 %262
    %264 = vrot.lane.b32.xlu0 %v243, 126
    %v265 = vpop.permute.xlu0 %264
    %266 = vrot.lane.b32.xlu0 %v244, 126
    %v267 = vpop.permute.xlu0 %266
    %268 = vrot.lane.b32.xlu0 %v245, 126
    %v269 = vpop.permute.xlu0 %268
    %v278 = vadd.f32 %v198, %v255
    %v279 = vadd.f32 %v199, %v257
    %v280 = vadd.f32 %v200, %v259
    %v281 = vadd.f32 %v201, %v261
    %v282 = vadd.f32 %v202, %v263
    %v283 = vadd.f32 %v203, %v265
    %v284 = vadd.f32 %v204, %v267
    %v285 = vadd.f32 %v205, %v269
    %286 = vrot.lane.b32.xlu0 %v104, 7
    %v287 = vpop.permute.xlu0 %286
    %v289 = vmul.f32 %v92, %v287
    %v290 = vmul.f32 %v93, %v287
    %v291 = vmul.f32 %v94, %v287
    %v292 = vmul.f32 %v95, %v287
    %v293 = vmul.f32 %v96, %v287
    %v294 = vmul.f32 %v97, %v287
    %v295 = vmul.f32 %v98, %v287
    %v296 = vmul.f32 %v99, %v287
    %297 = vset.pattern.permute.xlu0 3
    %298 = vperm.xlu0 %297, %v86
    %v299 = vpop.permute.xlu0 %298
    %301 = vset.pattern.permute.xlu0 3
    %302 = vperm.xlu0 %301, %v87
    %v303 = vpop.permute.xlu0 %302
    %305 = vset.pattern.permute.xlu0 3
    %306 = vperm.xlu0 %305, %v88
    %v307 = vpop.permute.xlu0 %306
    %309 = vset.pattern.permute.xlu0 3
    %310 = vperm.xlu0 %309, %v89
    %v311 = vpop.permute.xlu0 %310
    %v313 = vmul.f32 %v289, %v299
    %v314 = vmul.f32 %v290, %v303
    %v315 = vmul.f32 %v291, %v307
    %v316 = vmul.f32 %v292, %v311
    %v317 = vmul.f32 %v293, %v299
    %v318 = vmul.f32 %v294, %v303
    %v319 = vmul.f32 %v295, %v307
    %v320 = vmul.f32 %v296, %v311
    %329 = vrot.lane.b32.xlu0 %v313, 121
    %v330 = vpop.permute.xlu0 %329
    %331 = vrot.lane.b32.xlu0 %v314, 121
    %v332 = vpop.permute.xlu0 %331
    %333 = vrot.lane.b32.xlu0 %v315, 121
    %v334 = vpop.permute.xlu0 %333
    %335 = vrot.lane.b32.xlu0 %v316, 121
    %v336 = vpop.permute.xlu0 %335
    %337 = vrot.lane.b32.xlu0 %v317, 121
    %v338 = vpop.permute.xlu0 %337
    %339 = vrot.lane.b32.xlu0 %v318, 121
    %v340 = vpop.permute.xlu0 %339
    %341 = vrot.lane.b32.xlu0 %v319, 121
    %v342 = vpop.permute.xlu0 %341
    %343 = vrot.lane.b32.xlu0 %v320, 121
    %v344 = vpop.permute.xlu0 %343
    %v353 = vadd.f32 %v278, %v330
    %v354 = vadd.f32 %v279, %v332
    %v355 = vadd.f32 %v280, %v334
    %v356 = vadd.f32 %v281, %v336
    %v357 = vadd.f32 %v282, %v338
    %v358 = vadd.f32 %v283, %v340
    %v359 = vadd.f32 %v284, %v342
    %v360 = vadd.f32 %v285, %v344
    %361 = vset.pattern.permute.xlu0 4
    %362 = vperm.xlu0 %361, %v86
    %v363 = vpop.permute.xlu0 %362
    %365 = vset.pattern.permute.xlu0 4
    %366 = vperm.xlu0 %365, %v87
    %v367 = vpop.permute.xlu0 %366
    %369 = vset.pattern.permute.xlu0 4
    %370 = vperm.xlu0 %369, %v88
    %v371 = vpop.permute.xlu0 %370
    %373 = vset.pattern.permute.xlu0 4
    %374 = vperm.xlu0 %373, %v89
    %v375 = vpop.permute.xlu0 %374
    %v377 = vmul.f32 %v92, %v363
    %v378 = vmul.f32 %v93, %v367
    %v379 = vmul.f32 %v94, %v371
    %v380 = vmul.f32 %v95, %v375
    %v381 = vmul.f32 %v96, %v363
    %v382 = vmul.f32 %v97, %v367
    %v383 = vmul.f32 %v98, %v371
    %v384 = vmul.f32 %v99, %v375
    %393 = vrot.lane.b32.xlu0 %v377, 120
    %v394 = vpop.permute.xlu0 %393
    %395 = vrot.lane.b32.xlu0 %v378, 120
    %v396 = vpop.permute.xlu0 %395
    %397 = vrot.lane.b32.xlu0 %v379, 120
    %v398 = vpop.permute.xlu0 %397
    %399 = vrot.lane.b32.xlu0 %v380, 120
    %v400 = vpop.permute.xlu0 %399
    %401 = vrot.lane.b32.xlu0 %v381, 120
    %v402 = vpop.permute.xlu0 %401
    %403 = vrot.lane.b32.xlu0 %v382, 120
    %v404 = vpop.permute.xlu0 %403
    %405 = vrot.lane.b32.xlu0 %v383, 120
    %v406 = vpop.permute.xlu0 %405
    %407 = vrot.lane.b32.xlu0 %v384, 120
    %v408 = vpop.permute.xlu0 %407
    %v417 = vadd.f32 %v353, %v394
    %v418 = vadd.f32 %v354, %v396
    %v419 = vadd.f32 %v355, %v398
    %v420 = vadd.f32 %v356, %v400
    %v421 = vadd.f32 %v357, %v402
    %v422 = vadd.f32 %v358, %v404
    %v423 = vadd.f32 %v359, %v406
    %v424 = vadd.f32 %v360, %v408
    %425 = vrot.lane.b32.xlu0 %v210, 9
    %v426 = vpop.permute.xlu0 %425
    %v428 = vmul.f32 %v92, %v426
    %v429 = vmul.f32 %v93, %v426
    %v430 = vmul.f32 %v94, %v426
    %v431 = vmul.f32 %v95, %v426
    %v432 = vmul.f32 %v96, %v426
    %v433 = vmul.f32 %v97, %v426
    %v434 = vmul.f32 %v98, %v426
    %v435 = vmul.f32 %v99, %v426
    %436 = vset.pattern.permute.xlu0 5
    %437 = vperm.xlu0 %436, %v86
    %v438 = vpop.permute.xlu0 %437
    %440 = vset.pattern.permute.xlu0 5
    %441 = vperm.xlu0 %440, %v87
    %v442 = vpop.permute.xlu0 %441
    %444 = vset.pattern.permute.xlu0 5
    %445 = vperm.xlu0 %444, %v88
    %v446 = vpop.permute.xlu0 %445
    %448 = vset.pattern.permute.xlu0 5
    %449 = vperm.xlu0 %448, %v89
    %v450 = vpop.permute.xlu0 %449
    %v452 = vmul.f32 %v428, %v438
    %v453 = vmul.f32 %v429, %v442
    %v454 = vmul.f32 %v430, %v446
    %v455 = vmul.f32 %v431, %v450
    %v456 = vmul.f32 %v432, %v438
    %v457 = vmul.f32 %v433, %v442
    %v458 = vmul.f32 %v434, %v446
    %v459 = vmul.f32 %v435, %v450
    %468 = vrot.lane.b32.xlu0 %v452, 119
    %v469 = vpop.permute.xlu0 %468
    %470 = vrot.lane.b32.xlu0 %v453, 119
    %v471 = vpop.permute.xlu0 %470
    %472 = vrot.lane.b32.xlu0 %v454, 119
    %v473 = vpop.permute.xlu0 %472
    %474 = vrot.lane.b32.xlu0 %v455, 119
    %v475 = vpop.permute.xlu0 %474
    %476 = vrot.lane.b32.xlu0 %v456, 119
    %v477 = vpop.permute.xlu0 %476
    %478 = vrot.lane.b32.xlu0 %v457, 119
    %v479 = vpop.permute.xlu0 %478
    %480 = vrot.lane.b32.xlu0 %v458, 119
    %v481 = vpop.permute.xlu0 %480
    %482 = vrot.lane.b32.xlu0 %v459, 119
    %v483 = vpop.permute.xlu0 %482
    %v492 = vadd.f32 %v417, %v469
    %v493 = vadd.f32 %v418, %v471
    %v494 = vadd.f32 %v419, %v473
    %v495 = vadd.f32 %v420, %v475
    %v496 = vadd.f32 %v421, %v477
    %v497 = vadd.f32 %v422, %v479
    %v498 = vadd.f32 %v423, %v481
    %v499 = vadd.f32 %v424, %v483
    %500 = vrot.lane.b32.xlu0 %v104, 14
    %v501 = vpop.permute.xlu0 %500
    %v503 = vmul.f32 %v92, %v501
    %v504 = vmul.f32 %v93, %v501
    %v505 = vmul.f32 %v94, %v501
    %v506 = vmul.f32 %v95, %v501
    %v507 = vmul.f32 %v96, %v501
    %v508 = vmul.f32 %v97, %v501
    %v509 = vmul.f32 %v98, %v501
    %v510 = vmul.f32 %v99, %v501
    %511 = vset.pattern.permute.xlu0 6
    %512 = vperm.xlu0 %511, %v86
    %v513 = vpop.permute.xlu0 %512
    %515 = vset.pattern.permute.xlu0 6
    %516 = vperm.xlu0 %515, %v87
    %v517 = vpop.permute.xlu0 %516
    %519 = vset.pattern.permute.xlu0 6
    %520 = vperm.xlu0 %519, %v88
    %v521 = vpop.permute.xlu0 %520
    %523 = vset.pattern.permute.xlu0 6
    %524 = vperm.xlu0 %523, %v89
    %v525 = vpop.permute.xlu0 %524
    %v527 = vmul.f32 %v503, %v513
    %v528 = vmul.f32 %v504, %v517
    %v529 = vmul.f32 %v505, %v521
    %v530 = vmul.f32 %v506, %v525
    %v531 = vmul.f32 %v507, %v513
    %v532 = vmul.f32 %v508, %v517
    %v533 = vmul.f32 %v509, %v521
    %v534 = vmul.f32 %v510, %v525
    %543 = vrot.lane.b32.xlu0 %v527, 114
    %v544 = vpop.permute.xlu0 %543
    %545 = vrot.lane.b32.xlu0 %v528, 114
    %v546 = vpop.permute.xlu0 %545
    %547 = vrot.lane.b32.xlu0 %v529, 114
    %v548 = vpop.permute.xlu0 %547
    %549 = vrot.lane.b32.xlu0 %v530, 114
    %v550 = vpop.permute.xlu0 %549
    %551 = vrot.lane.b32.xlu0 %v531, 114
    %v552 = vpop.permute.xlu0 %551
    %553 = vrot.lane.b32.xlu0 %v532, 114
    %v554 = vpop.permute.xlu0 %553
    %555 = vrot.lane.b32.xlu0 %v533, 114
    %v556 = vpop.permute.xlu0 %555
    %557 = vrot.lane.b32.xlu0 %v534, 114
    %v558 = vpop.permute.xlu0 %557
    %v567 = vadd.f32 %v492, %v544
    %v568 = vadd.f32 %v493, %v546
    %v569 = vadd.f32 %v494, %v548
    %v570 = vadd.f32 %v495, %v550
    %v571 = vadd.f32 %v496, %v552
    %v572 = vadd.f32 %v497, %v554
    %v573 = vadd.f32 %v498, %v556
    %v574 = vadd.f32 %v499, %v558
    %575 = vset.pattern.permute.xlu0 7
    %576 = vperm.xlu0 %575, %v86
    %v577 = vpop.permute.xlu0 %576
    %579 = vset.pattern.permute.xlu0 7
    %580 = vperm.xlu0 %579, %v87
    %v581 = vpop.permute.xlu0 %580
    %583 = vset.pattern.permute.xlu0 7
    %584 = vperm.xlu0 %583, %v88
    %v585 = vpop.permute.xlu0 %584
    %587 = vset.pattern.permute.xlu0 7
    %588 = vperm.xlu0 %587, %v89
    %v589 = vpop.permute.xlu0 %588
    %v591 = vmul.f32 %v92, %v577
    %v592 = vmul.f32 %v93, %v581
    %v593 = vmul.f32 %v94, %v585
    %v594 = vmul.f32 %v95, %v589
    %v595 = vmul.f32 %v96, %v577
    %v596 = vmul.f32 %v97, %v581
    %v597 = vmul.f32 %v98, %v585
    %v598 = vmul.f32 %v99, %v589
    %607 = vrot.lane.b32.xlu0 %v591, 113
    %v608 = vpop.permute.xlu0 %607
    %609 = vrot.lane.b32.xlu0 %v592, 113
    %v610 = vpop.permute.xlu0 %609
    %611 = vrot.lane.b32.xlu0 %v593, 113
    %v612 = vpop.permute.xlu0 %611
    %613 = vrot.lane.b32.xlu0 %v594, 113
    %v614 = vpop.permute.xlu0 %613
    %615 = vrot.lane.b32.xlu0 %v595, 113
    %v616 = vpop.permute.xlu0 %615
    %617 = vrot.lane.b32.xlu0 %v596, 113
    %v618 = vpop.permute.xlu0 %617
    %619 = vrot.lane.b32.xlu0 %v597, 113
    %v620 = vpop.permute.xlu0 %619
    %621 = vrot.lane.b32.xlu0 %v598, 113
    %v622 = vpop.permute.xlu0 %621
    %v631 = vadd.f32 %v567, %v608
    %v632 = vadd.f32 %v568, %v610
    %v633 = vadd.f32 %v569, %v612
    %v634 = vadd.f32 %v570, %v614
    %v635 = vadd.f32 %v571, %v616
    %v636 = vadd.f32 %v572, %v618
    %v637 = vadd.f32 %v573, %v620
    %v638 = vadd.f32 %v574, %v622
    %639 = vrot.lane.b32.xlu0 %v210, 16
    %v640 = vpop.permute.xlu0 %639
    %v642 = vmul.f32 %v92, %v640
    %v643 = vmul.f32 %v93, %v640
    %v644 = vmul.f32 %v94, %v640
    %v645 = vmul.f32 %v95, %v640
    %v646 = vmul.f32 %v96, %v640
    %v647 = vmul.f32 %v97, %v640
    %v648 = vmul.f32 %v98, %v640
    %v649 = vmul.f32 %v99, %v640
    %650 = vset.pattern.permute.xlu0 8
    %651 = vperm.xlu0 %650, %v86
    %v652 = vpop.permute.xlu0 %651
    %654 = vset.pattern.permute.xlu0 8
    %655 = vperm.xlu0 %654, %v87
    %v656 = vpop.permute.xlu0 %655
    %658 = vset.pattern.permute.xlu0 8
    %659 = vperm.xlu0 %658, %v88
    %v660 = vpop.permute.xlu0 %659
    %662 = vset.pattern.permute.xlu0 8
    %663 = vperm.xlu0 %662, %v89
    %v664 = vpop.permute.xlu0 %663
    %v666 = vmul.f32 %v642, %v652
    %v667 = vmul.f32 %v643, %v656
    %v668 = vmul.f32 %v644, %v660
    %v669 = vmul.f32 %v645, %v664
    %v670 = vmul.f32 %v646, %v652
    %v671 = vmul.f32 %v647, %v656
    %v672 = vmul.f32 %v648, %v660
    %v673 = vmul.f32 %v649, %v664
    %682 = vrot.lane.b32.xlu0 %v666, 112
    %v683 = vpop.permute.xlu0 %682
    %684 = vrot.lane.b32.xlu0 %v667, 112
    %v685 = vpop.permute.xlu0 %684
    %686 = vrot.lane.b32.xlu0 %v668, 112
    %v687 = vpop.permute.xlu0 %686
    %688 = vrot.lane.b32.xlu0 %v669, 112
    %v689 = vpop.permute.xlu0 %688
    %690 = vrot.lane.b32.xlu0 %v670, 112
    %v691 = vpop.permute.xlu0 %690
    %692 = vrot.lane.b32.xlu0 %v671, 112
    %v693 = vpop.permute.xlu0 %692
    %694 = vrot.lane.b32.xlu0 %v672, 112
    %v695 = vpop.permute.xlu0 %694
    %696 = vrot.lane.b32.xlu0 %v673, 112
    %v697 = vpop.permute.xlu0 %696
    %v706 = vadd.f32 %v631, %v683
    %v707 = vadd.f32 %v632, %v685
    %v708 = vadd.f32 %v633, %v687
    %v709 = vadd.f32 %v634, %v689
    %v710 = vadd.f32 %v635, %v691
    %v711 = vadd.f32 %v636, %v693
    %v712 = vadd.f32 %v637, %v695
    %v713 = vadd.f32 %v638, %v697
    %vm714 = vcmask 400384
    %v715 = vsel %vm714, %v706, 0.0
    %v716 = vsel %vm714, %v710, 0.0
    %v717 = vadd.f32 %v715, %v716
    %718 = vadd.xlane.f32.xlu0 %v717
    %v719 = vpop.xlane.xlu0 %718
    %v720 = vsel %vm714, %v707, 0.0
    %v721 = vsel %vm714, %v711, 0.0
    %v722 = vadd.f32 %v720, %v721
    %723 = vadd.xlane.f32.xlu0 %v722
    %v724 = vpop.xlane.xlu0 %723
    %v725 = vsel %vm714, %v708, 0.0
    %v726 = vsel %vm714, %v712, 0.0
    %v727 = vadd.f32 %v725, %v726
    %728 = vadd.xlane.f32.xlu0 %v727
    %v729 = vpop.xlane.xlu0 %728
    %v730 = vsel %vm714, %v709, 0.0
    %v731 = vsel %vm714, %v713, 0.0
    %v732 = vadd.f32 %v730, %v731
    %733 = vadd.xlane.f32.xlu0 %v732
    %v734 = vpop.xlane.xlu0 %733
    %v735 = vrcp.pop 98.0
    %v736 = vmul.f32 %v719, %v735
    %v737 = vmul.f32 %v724, %v735
    %v738 = vmul.f32 %v729, %v735
    %v739 = vmul.f32 %v734, %v735
    %v740 = vsub.f32 %v706, %v736
    %v741 = vsub.f32 %v707, %v737
    %v742 = vsub.f32 %v708, %v738
    %v743 = vsub.f32 %v709, %v739
    %v744 = vsub.f32 %v710, %v736
    %v745 = vsub.f32 %v711, %v737
    %v746 = vsub.f32 %v712, %v738
    %v747 = vsub.f32 %v713, %v739
    %v748 = vmul.f32 %v740, %v740
    %v749 = vmul.f32 %v741, %v741
    %v750 = vmul.f32 %v742, %v742
    %v751 = vmul.f32 %v743, %v743
    %v752 = vmul.f32 %v744, %v744
    %v753 = vmul.f32 %v745, %v745
    %v754 = vmul.f32 %v746, %v746
    %v755 = vmul.f32 %v747, %v747
    %v756 = vsel %vm714, %v748, 0.0
    %v757 = vsel %vm714, %v752, 0.0
    %v758 = vadd.f32 %v756, %v757
    %759 = vadd.xlane.f32.xlu0 %v758
    %v760 = vpop.xlane.xlu0 %759
    %v761 = vsel %vm714, %v749, 0.0
    %v762 = vsel %vm714, %v753, 0.0
    %v763 = vadd.f32 %v761, %v762
    %764 = vadd.xlane.f32.xlu0 %v763
    %v765 = vpop.xlane.xlu0 %764
    %v766 = vsel %vm714, %v750, 0.0
    %v767 = vsel %vm714, %v754, 0.0
    %v768 = vadd.f32 %v766, %v767
    %769 = vadd.xlane.f32.xlu0 %v768
    %v770 = vpop.xlane.xlu0 %769
    %v771 = vsel %vm714, %v751, 0.0
    %v772 = vsel %vm714, %v755, 0.0
    %v773 = vadd.f32 %v771, %v772
    %774 = vadd.xlane.f32.xlu0 %v773
    %v775 = vpop.xlane.xlu0 %774
    %v776 = vmul.f32 %v760, %v735
    %v777 = vmul.f32 %v765, %v735
    %v778 = vmul.f32 %v770, %v735
    %v779 = vmul.f32 %v775, %v735
    %v780 = vadd.f32 %v776, 1e-05
    %v781 = vadd.f32 %v777, 1e-05
    %v782 = vadd.f32 %v778, 1e-05
    %v783 = vadd.f32 %v779, 1e-05
    %v784 = vrsqrt.pop %v780
    %v785 = vrsqrt.pop %v781
    %v786 = vrsqrt.pop %v782
    %v787 = vrsqrt.pop %v783
    %v788 = vmul.f32 %v86, %v784
    %v789 = vmul.f32 %v87, %v785
    %v790 = vmul.f32 %v88, %v786
    %v791 = vmul.f32 %v89, %v787
    %793 = vset.pattern.permute.xlu0 9
    %794 = vperm.xlu0 %793, %v788
    %v795 = vpop.permute.xlu0 %794
    %798 = vset.pattern.permute.xlu0 9
    %799 = vperm.xlu0 %798, %v789
    %v800 = vpop.permute.xlu0 %799
    %803 = vset.pattern.permute.xlu0 9
    %804 = vperm.xlu0 %803, %v790
    %v805 = vpop.permute.xlu0 %804
    %808 = vset.pattern.permute.xlu0 9
    %809 = vperm.xlu0 %808, %v791
    %v810 = vpop.permute.xlu0 %809
    %v812 = vmul.f32 %v740, %v795
    %v813 = vmul.f32 %v741, %v800
    %v814 = vmul.f32 %v742, %v805
    %v815 = vmul.f32 %v743, %v810
    %v816 = vmul.f32 %v744, %v795
    %v817 = vmul.f32 %v745, %v800
    %v818 = vmul.f32 %v746, %v805
    %v819 = vmul.f32 %v747, %v810
    %820 = vset.pattern.permute.xlu0 10
    %821 = vperm.xlu0 %820, %v86
    %v822 = vpop.permute.xlu0 %821
    %824 = vset.pattern.permute.xlu0 10
    %825 = vperm.xlu0 %824, %v87
    %v826 = vpop.permute.xlu0 %825
    %828 = vset.pattern.permute.xlu0 10
    %829 = vperm.xlu0 %828, %v88
    %v830 = vpop.permute.xlu0 %829
    %832 = vset.pattern.permute.xlu0 10
    %833 = vperm.xlu0 %832, %v89
    %v834 = vpop.permute.xlu0 %833
    %v836 = vadd.f32 %v812, %v822
    %v837 = vadd.f32 %v813, %v826
    %v838 = vadd.f32 %v814, %v830
    %v839 = vadd.f32 %v815, %v834
    %v840 = vadd.f32 %v816, %v822
    %v841 = vadd.f32 %v817, %v826
    %v842 = vadd.f32 %v818, %v830
    %v843 = vadd.f32 %v819, %v834
    %844 = vst.msk [vmem:[#allocation6] sm:$0xff] %vm714, %v836
    %845 = vst.msk [vmem:[#allocation6 + $0x8] sm:$0xff] %vm714, %v837
    %846 = vst.msk [vmem:[#allocation6 + $0x10] sm:$0xff] %vm714, %v838
    %847 = vst.msk [vmem:[#allocation6 + $0x18] sm:$0xff] %vm714, %v839
    %848 = vst.msk [vmem:[#allocation6 + $0x20] sm:$0xff] %vm714, %v840
    %849 = vst.msk [vmem:[#allocation6 + $0x28] sm:$0xff] %vm714, %v841
    %850 = vst.msk [vmem:[#allocation6 + $0x30] sm:$0xff] %vm714, %v842
    %851 = vst.msk [vmem:[#allocation6 + $0x38] sm:$0xff] %vm714, %v843
    // Predicated region
    $region18: #{tpu_custom_call.1} parent=1 // pred_check
      _
    $region19: #{tpu_custom_call.1} parent=1 // pred_check_branch
      %853 = sbr.rel (0) target = $region21
    $region20: #{tpu_custom_call.1} parent=1 // pred_region
      %s855 = ssub.s32 1024, 1024
      %856 = vsyncadd [#allocation5], %s855
      %s857 = sshll.u32 [#allocation6], 4
      %s858 = int_to_ptr.vmem [resolvable:$true] %s857
      %863 = dma.vmem_to_hbm [thread:$0]  %s858, 1024, %s3, [#allocation5], 128, 128, 8
    $region21: #{tpu_custom_call.1} parent=1 // pred_fallthru
      _
    // Predicated region
    $region22: #{tpu_custom_call.1} parent=1 // pred_check
      _
    $region23: #{tpu_custom_call.1} parent=1 // pred_check_branch
      %865 = sbr.rel (0) target = $region25
    $region24: #{tpu_custom_call.1} parent=1 // pred_region
      %866 = dma.done [#allocation5], 1024
    $region25: #{tpu_custom_call.1} parent=1 // pred_fallthru
      _
    %867 = vsyncpa [#allocation4], 1
    %868 = vsyncpa [#allocation5], 1

</llo_original>
